<compile_context>
chip_gen: v7x
topology: tpu7x:2x2x1
jax: 0.10.0
libtpu: 0.0.40
codegen_flags: <defaults>
</compile_context>

<pallas_src>
import jax
import jax.numpy as jnp
from jax.experimental import pallas as pl
from jax.experimental.pallas import tpu as pltpu


def net_kernel(x_ref, w1_ref, b1_ref, w2_ref, b2_ref, o_ref):
    # fc1 + bias.  x: (tb, in_dim), w1: (in_dim, h_pad), b1: (1, h_pad).
    h = jnp.dot(x_ref[...], w1_ref[...], preferred_element_type=jnp.float32)
    h = h + b1_ref[...]
    # sigmoid(h) = 0.5 * (tanh(h / 2) + 1): single EUP transcendental.
    h = 0.5 * (jnp.tanh(0.5 * h) + 1.0)
    # fc2.  Padded hidden lanes hold sigmoid(0) = 0.5, but the matching w2 rows
    # are exactly zero, so they contribute nothing to the logits.
    logits = jnp.dot(h, w2_ref[...], preferred_element_type=jnp.float32)
    # b2 carries -1e30 in padded output lanes -> acts as the -inf mask for the
    # log_softmax below (exp underflows to 0), no iota/where needed.
    logits = logits + b2_ref[...]
    m = jnp.max(logits, axis=-1, keepdims=True)
    s = logits - m
    lse = jnp.log(jnp.sum(jnp.exp(s), axis=-1, keepdims=True))
    o_ref[...] = s - lse


def net_forward(x, w1, b1, w2, b2, *, batch_tile=2048):
    """x: (B, 15); w1: (15, H); b1: (1, H); w2: (H, 4); b2: (1, 4)."""
    B, in_dim = x.shape
    neurons = w1.shape[1]
    out_dim = w2.shape[1]

    # Hidden dim padded to a full lane width (resident weights only: no per-tile
    # HBM cost, identical vreg count for h).  Output padded only to 8 lanes.
    h_pad = max(128, pl.cdiv(neurons, 128) * 128)
    out_pad = max(8, out_dim)

    # Batch tile: multiple of 8 sublanes, capped at batch_tile; force >= 2 grid
    # steps when possible so both v7x TensorCores get work ("parallel" axis).
    b8 = max(8, ((B + 7) // 8) * 8)
    tb = min(batch_tile, b8)
    if b8 // tb < 2 and b8 >= 16:
        tb = ((pl.cdiv(b8, 2) + 7) // 8) * 8
    b_pad = pl.cdiv(b8, tb) * tb

    # Row-pad x only (no lane padding); padded rows are sliced off at the end.
    x_p = x.astype(jnp.float32)
    if b_pad != B:
        x_p = jnp.pad(x_p, ((0, b_pad - B), (0, 0)))

    w1_p = jnp.zeros((in_dim, h_pad), jnp.float32)
    w1_p = w1_p.at[:, :neurons].set(w1.astype(jnp.float32))
    b1_p = jnp.zeros((1, h_pad), jnp.float32)
    b1_p = b1_p.at[0, :neurons].set(b1.reshape(-1).astype(jnp.float32))
    w2_p = jnp.zeros((h_pad, out_pad), jnp.float32)
    w2_p = w2_p.at[:neurons, :out_dim].set(w2.astype(jnp.float32))
    # Bake the padded-lane mask into b2: lanes >= out_dim become -1e30.
    b2_p = jnp.full((1, out_pad), -1e30, jnp.float32)
    b2_p = b2_p.at[0, :out_dim].set(b2.reshape(-1).astype(jnp.float32))

    out = pl.pallas_call(
        net_kernel,
        out_shape=jax.ShapeDtypeStruct((b_pad, out_pad), jnp.float32),
        grid=(b_pad // tb,),
        in_specs=[
            pl.BlockSpec((tb, in_dim), lambda i: (i, 0)),      # x: streamed per batch tile
            pl.BlockSpec((in_dim, h_pad), lambda i: (0, 0)),   # w1: resident in VMEM
            pl.BlockSpec((1, h_pad), lambda i: (0, 0)),        # b1: resident in VMEM
            pl.BlockSpec((h_pad, out_pad), lambda i: (0, 0)),  # w2: resident in VMEM
            pl.BlockSpec((1, out_pad), lambda i: (0, 0)),      # b2 (+mask): resident
        ],
        out_specs=pl.BlockSpec((tb, out_pad), lambda i: (i, 0)),
        compiler_params=pltpu.CompilerParams(
            dimension_semantics=("parallel",),                 # megacore-shard batch tiles
        ),
    )(x_p, w1_p, b1_p, w2_p, b2_p)
    return out[:B, :out_dim]


def init_params(key, neurons=8, in_dim=15, out_dim=4):
    # xavier_normal_ for weights; PyTorch Linear default bias init U(+-1/sqrt(fan_in)).
    k1, k2, k3, k4 = jax.random.split(key, 4)
    std1 = (2.0 / (in_dim + neurons)) ** 0.5
    std2 = (2.0 / (neurons + out_dim)) ** 0.5
    w1 = std1 * jax.random.normal(k1, (in_dim, neurons), dtype=jnp.float32)
    w2 = std2 * jax.random.normal(k2, (neurons, out_dim), dtype=jnp.float32)
    bound1 = 1.0 / (in_dim ** 0.5)
    bound2 = 1.0 / (neurons ** 0.5)
    b1 = jax.random.uniform(k3, (1, neurons), jnp.float32, -bound1, bound1)
    b2 = jax.random.uniform(k4, (1, out_dim), jnp.float32, -bound2, bound2)
    return w1, b1, w2, b2


if __name__ == "__main__":
    key = jax.random.PRNGKey(0)
    kx1, kx2, kp = jax.random.split(key, 3)

    in_dim, neurons, out_dim = 15, 8, 4
    w1, b1, w2, b2 = init_params(kp, neurons=neurons, in_dim=in_dim, out_dim=out_dim)

    # Small batch (single grid step) and a ragged larger batch (exercises the
    # row-padding + >=2-step parallel grid path).
    for B, kk in ((8, kx1), (300, kx2)):
        x = jax.random.normal(kk, (B, in_dim), dtype=jnp.float32)
        out = net_forward(x, w1, b1, w2, b2)
        jax.block_until_ready(out)

        # Pure-JAX reference
        h_ref = jax.nn.sigmoid(x @ w1 + b1)
        ref = jax.nn.log_softmax(h_ref @ w2 + b2, axis=-1)
        assert out.shape == (B, out_dim)
        assert jnp.allclose(out, ref, atol=1e-5), f"mismatch vs reference at B={B}"

    print("KERNEL_OK")
</pallas_src>

<mosaic_0001>
module attributes {stable_mosaic.version = 11 : i64} {
  func.func @net_kernel(%arg0: i32, %arg1: memref<8x15xf32, #tpu.memory_space<vmem>>, %arg2: memref<15x128xf32, #tpu.memory_space<vmem>>, %arg3: memref<1x128xf32, #tpu.memory_space<vmem>>, %arg4: memref<128x8xf32, #tpu.memory_space<vmem>>, %arg5: memref<1x8xf32, #tpu.memory_space<vmem>>, %arg6: memref<8x8xf32, #tpu.memory_space<vmem>>) attributes {dimension_semantics = [#tpu.dimension_semantics<parallel>], iteration_bounds = array<i64: 1>, scalar_prefetch = 0 : i64, scratch_operands = 0 : i64, tpu.core_type = #tpu.core_type<tc>, window_params = [{transform_indices = @transform_0, window_bounds = array<i64: 8, 15>}, {pipeline_mode = #tpu.pipeline_mode<synchronous>, transform_indices = @transform_1, window_bounds = array<i64: 15, 128>}, {pipeline_mode = #tpu.pipeline_mode<synchronous>, transform_indices = @transform_2, window_bounds = array<i64: 1, 128>}, {pipeline_mode = #tpu.pipeline_mode<synchronous>, transform_indices = @transform_3, window_bounds = array<i64: 128, 8>}, {pipeline_mode = #tpu.pipeline_mode<synchronous>, transform_indices = @transform_4, window_bounds = array<i64: 1, 8>}, {transform_indices = @transform_5, window_bounds = array<i64: 8, 8>}]} {
    %c0 = arith.constant 0 : index
    %c0_0 = arith.constant 0 : index
    %0 = vector.load %arg1[%c0, %c0_0] : memref<8x15xf32, #tpu.memory_space<vmem>>, vector<8x15xf32>
    %c0_1 = arith.constant 0 : index
    %c0_2 = arith.constant 0 : index
    %1 = vector.load %arg2[%c0_1, %c0_2] : memref<15x128xf32, #tpu.memory_space<vmem>>, vector<15x128xf32>
    %cst = arith.constant dense<0.000000e+00> : vector<8x128xf32>
    %2 = tpu.matmul %0, %1, %cst {dimension_numbers = #tpu.dot_dimension_numbers<[1], [0], [0], [1], [0, 0, 1, 1], [], []>} : vector<8x15xf32>, vector<15x128xf32>, vector<8x128xf32> -> vector<8x128xf32>
    %c0_3 = arith.constant 0 : index
    %c0_4 = arith.constant 0 : index
    %3 = vector.load %arg3[%c0_3, %c0_4] : memref<1x128xf32, #tpu.memory_space<vmem>>, vector<1x128xf32>
    %4 = vector.broadcast %3 : vector<1x128xf32> to vector<8x128xf32>
    %5 = arith.addf %2, %4 : vector<8x128xf32>
    %cst_5 = arith.constant 5.000000e-01 : f32
    %6 = vector.broadcast %cst_5 : f32 to vector<8x128xf32>
    %7 = arith.mulf %6, %5 : vector<8x128xf32>
    %8 = math.tanh %7 : vector<8x128xf32>
    %cst_6 = arith.constant 1.000000e+00 : f32
    %9 = vector.broadcast %cst_6 : f32 to vector<8x128xf32>
    %10 = arith.addf %8, %9 : vector<8x128xf32>
    %cst_7 = arith.constant 5.000000e-01 : f32
    %11 = vector.broadcast %cst_7 : f32 to vector<8x128xf32>
    %12 = arith.mulf %11, %10 : vector<8x128xf32>
    %c0_8 = arith.constant 0 : index
    %c0_9 = arith.constant 0 : index
    %13 = vector.load %arg4[%c0_8, %c0_9] : memref<128x8xf32, #tpu.memory_space<vmem>>, vector<128x8xf32>
    %cst_10 = arith.constant dense<0.000000e+00> : vector<8x8xf32>
    %14 = tpu.matmul %12, %13, %cst_10 {dimension_numbers = #tpu.dot_dimension_numbers<[1], [0], [0], [1], [0, 0, 1, 1], [], []>} : vector<8x128xf32>, vector<128x8xf32>, vector<8x8xf32> -> vector<8x8xf32>
    %c0_11 = arith.constant 0 : index
    %c0_12 = arith.constant 0 : index
    %15 = vector.load %arg5[%c0_11, %c0_12] : memref<1x8xf32, #tpu.memory_space<vmem>>, vector<1x8xf32>
    %16 = vector.broadcast %15 : vector<1x8xf32> to vector<8x8xf32>
    %17 = arith.addf %14, %16 : vector<8x8xf32>
    %cst_13 = arith.constant dense<0xFF800000> : vector<8xf32>
    %18 = vector.multi_reduction <maximumf>, %17, %cst_13 [1] : vector<8x8xf32> to vector<8xf32>
    %19 = vector.shape_cast %18 : vector<8xf32> to vector<8x1xf32>
    %20 = vector.broadcast %19 : vector<8x1xf32> to vector<8x8xf32>
    %21 = arith.subf %17, %20 : vector<8x8xf32>
    %22 = math.exp %21 : vector<8x8xf32>
    %cst_14 = arith.constant dense<0.000000e+00> : vector<8xf32>
    %23 = vector.multi_reduction <add>, %22, %cst_14 [1] : vector<8x8xf32> to vector<8xf32>
    %24 = vector.shape_cast %23 : vector<8xf32> to vector<8x1xf32>
    %25 = math.log %24 : vector<8x1xf32>
    %26 = vector.broadcast %25 : vector<8x1xf32> to vector<8x8xf32>
    %27 = arith.subf %21, %26 : vector<8x8xf32>
    %c0_15 = arith.constant 0 : index
    %c0_16 = arith.constant 0 : index
    %28 = vector.load %arg6[%c0_15, %c0_16] : memref<8x8xf32, #tpu.memory_space<vmem>>, vector<8x8xf32>
    tpu.vector_store %arg6[%c0_15, %c0_16], %27 {strides = array<i32>} : memref<8x8xf32, #tpu.memory_space<vmem>>, vector<8x8xf32>,
    return
  }
  func.func @transform_0(%arg0: i32) -> (i32, i32) {
    %c0_i32 = arith.constant 0 : i32
    %c0_i32_0 = arith.constant 0 : i32
    return %arg0, %c0_i32 : i32, i32
  }
  func.func @transform_1(%arg0: i32) -> (i32, i32) {
    %c0_i32 = arith.constant 0 : i32
    %c0_i32_0 = arith.constant 0 : i32
    %c0_i32_1 = arith.constant 0 : i32
    return %c0_i32, %c0_i32_0 : i32, i32
  }
  func.func @transform_2(%arg0: i32) -> (i32, i32) {
    %c0_i32 = arith.constant 0 : i32
    %c0_i32_0 = arith.constant 0 : i32
    %c0_i32_1 = arith.constant 0 : i32
    return %c0_i32, %c0_i32_0 : i32, i32
  }
  func.func @transform_3(%arg0: i32) -> (i32, i32) {
    %c0_i32 = arith.constant 0 : i32
    %c0_i32_0 = arith.constant 0 : i32
    %c0_i32_1 = arith.constant 0 : i32
    return %c0_i32, %c0_i32_0 : i32, i32
  }
  func.func @transform_4(%arg0: i32) -> (i32, i32) {
    %c0_i32 = arith.constant 0 : i32
    %c0_i32_0 = arith.constant 0 : i32
    %c0_i32_1 = arith.constant 0 : i32
    return %c0_i32, %c0_i32_0 : i32, i32
  }
  func.func @transform_5(%arg0: i32) -> (i32, i32) {
    %c0_i32 = arith.constant 0 : i32
    %c0_i32_0 = arith.constant 0 : i32
    return %arg0, %c0_i32 : i32, i32
  }
}

</mosaic_0001>

<llo_original>
// kernel: tpu_custom_call.1
$region0: #{tpu_custom_call.1}
  #allocation0 [shape = 'u32[]', space=smem, size = 0x4, offset = 0x4, fixed_abs, tag = 'smem constant byte address 0x4 - core index']
  #allocation1 [shape = 'u32[144,128]{1,0:T(1,128)}', space=vmem, size = 0x12000, scoped, tag = 'internal scratch']
  %s0 = inlined_call_operand.vmem [shape: f32[8,15], index: 0, kind: input, shape index: {}]
  %s1 = inlined_call_operand.vmem [shape: f32[15,128], index: 1, kind: input, shape index: {}]
  %s2 = inlined_call_operand.vmem [shape: f32[1,128], index: 2, kind: input, shape index: {}]
  %s3 = inlined_call_operand.vmem [shape: f32[128,8], index: 3, kind: input, shape index: {}]
  %s4 = inlined_call_operand.vmem [shape: f32[1,8], index: 4, kind: input, shape index: {}]
  %s5 = inlined_call_operand.hbm [shape: f32[8,8], index: 5, kind: output, shape index: {}]
  %s6 = sld [smem:[#allocation0]]
  $region30: #{tpu_custom_call.1} parent=0
    _
  %s8 = ssub.s32 1, %s6
  %s9 = scalar_select 0, %s8, %s6
  $region1: #{tpu_custom_call.1} parent=0
    #allocation2 [shape = 'u8[4096]{0}', space=vmem, size = 0x1000, scoped, tag = 'output window, operand 0, single buffered']
    #allocation3 [shape = 's32[1]{0}', space=sflag, size = 0x4, scoped, tag = 'scoped memory for tpu_custom_call.1']
    %10 = vsyncpa [#allocation3], 0
    // Predicated region
    $region2: #{tpu_custom_call.1} parent=1 // pred_check
      _
    $region3: #{tpu_custom_call.1} parent=1 // pred_check_branch
      %12 = sbr.rel (0) target = $region5
    $region4: #{tpu_custom_call.1} parent=1 // pred_region
      _
    $region5: #{tpu_custom_call.1} parent=1 // pred_fallthru
      _
    // Predicated region
    $region6: #{tpu_custom_call.1} parent=1 // pred_check
      _
    $region7: #{tpu_custom_call.1} parent=1 // pred_check_branch
      %14 = sbr.rel (0) target = $region9
    $region8: #{tpu_custom_call.1} parent=1 // pred_region
      _
    $region9: #{tpu_custom_call.1} parent=1 // pred_fallthru
      _
    // Predicated region
    $region10: #{tpu_custom_call.1} parent=1 // pred_check
      _
    $region11: #{tpu_custom_call.1} parent=1 // pred_check_branch
      %16 = sbr.rel (0) target = $region13
    $region12: #{tpu_custom_call.1} parent=1 // pred_region
      _
    $region13: #{tpu_custom_call.1} parent=1 // pred_fallthru
      _
    // Predicated region
    $region14: #{tpu_custom_call.1} parent=1 // pred_check
      _
    $region15: #{tpu_custom_call.1} parent=1 // pred_check_branch
      %18 = sbr.rel (0) target = $region17
    $region16: #{tpu_custom_call.1} parent=1 // pred_region
      _
    $region17: #{tpu_custom_call.1} parent=1 // pred_fallthru
      _
    // Predicated region
    $region18: #{tpu_custom_call.1} parent=1 // pred_check
      _
    $region19: #{tpu_custom_call.1} parent=1 // pred_check_branch
      %20 = sbr.rel (0) target = $region21
    $region20: #{tpu_custom_call.1} parent=1 // pred_region
      _
    $region21: #{tpu_custom_call.1} parent=1 // pred_fallthru
      _
    %v21 = vld [vmem:[%s0] sm:$0xff]
    %v22 = vld [vmem:[%s1] sm:$0xff]
    %v23 = vld [vmem:[%s1 + $0x8] sm:$0x7f]
    %v24 = vld [vmem:[%s2] sm:$0x1]
    %v26 = vlaneseq
    %v27 = vshrl.u32 %v26, 7
    %v28 = vsub.s32 0, %v27
    %v29 = vrot.slane %v24, %v28
    %vm31 = vcmask 121856
    %v33 = vsel %vm31, %v21, 0
    %vm35 = vcmask 1046528
    %v37 = vsel %vm35, %v23, 0
    %39 = vmatprep.subr.mxu0 0.0
    %40 = vmatpush1.msra.mxu0 %v22
    %41 = vmatprep.subr.mxu0 0.0
    %42 = vmatpush1.msra.mxu0 %v37
    %43 = vmatprep.subr.mxu0 0.0
    %44 = vmatpush1.msra.mxu0 0.0
    %45 = vmatprep.subr.mxu0 0.0
    %46 = vmatpush1.msra.mxu0 0.0
    %47 = vmatprep.subr.mxu0 0.0
    %48 = vmatpush1.msra.mxu0 0.0
    %49 = vmatprep.subr.mxu0 0.0
    %50 = vmatpush1.msra.mxu0 0.0
    %51 = vmatprep.subr.mxu0 0.0
    %52 = vmatpush1.msra.mxu0 0.0
    %53 = vmatprep.subr.mxu0 0.0
    %54 = vmatpush1.msra.mxu0 0.0
    %55 = vmatprep.subr.mxu0 0.0
    %56 = vmatpush1.msra.mxu0 0.0
    %57 = vmatprep.subr.mxu0 0.0
    %58 = vmatpush1.msra.mxu0 0.0
    %59 = vmatprep.subr.mxu0 0.0
    %60 = vmatpush1.msra.mxu0 0.0
    %61 = vmatprep.subr.mxu0 0.0
    %62 = vmatpush1.msra.mxu0 0.0
    %63 = vmatprep.subr.mxu0 0.0
    %64 = vmatpush1.msra.mxu0 0.0
    %65 = vmatprep.subr.mxu0 0.0
    %66 = vmatpush1.msra.mxu0 0.0
    %67 = vmatprep.subr.mxu0 0.0
    %68 = vmatpush1.msra.mxu0 0.0
    %69 = vmatprep.subr.mxu0 0.0
    %70 = vmatpush1.msra.mxu0 0.0
    %71 = vmatprep.subr.mxu0 0.0
    %72 = vmatpush1.msra.mxu0 0.0
    %73 = vmatprep.subr.mxu0 0.0
    %74 = vmatpush1.msra.mxu0 0.0
    %75 = vmatprep.subr.mxu0 0.0
    %76 = vmatpush1.msra.mxu0 0.0
    %77 = vmatprep.subr.mxu0 0.0
    %78 = vmatpush1.msra.mxu0 0.0
    %79 = vmatprep.subr.mxu0 0.0
    %80 = vmatpush1.msra.mxu0 0.0
    %81 = vmatprep.subr.mxu0 0.0
    %82 = vmatpush1.msra.mxu0 0.0
    %83 = vmatprep.subr.mxu0 0.0
    %84 = vmatpush1.msra.mxu0 0.0
    %85 = vmatprep.subr.mxu0 0.0
    %86 = vmatpush1.msra.mxu0 0.0
    %87 = vmatprep.subr.mxu0 0.0
    %88 = vmatpush1.msra.mxu0 0.0
    %89 = vmatprep.subr.mxu0 0.0
    %90 = vmatpush1.msra.mxu0 0.0
    %91 = vmatprep.subr.mxu0 0.0
    %92 = vmatpush1.msra.mxu0 0.0
    %93 = vmatprep.subr.mxu0 0.0
    %94 = vmatpush1.msra.mxu0 0.0
    %95 = vmatprep.subr.mxu0 0.0
    %96 = vmatpush1.msra.mxu0 0.0
    %97 = vmatprep.subr.mxu0 0.0
    %98 = vmatpush1.msra.mxu0 0.0
    %99 = vmatprep.subr.mxu0 0.0
    %100 = vmatpush1.msra.mxu0 0.0
    %101 = vmatprep.subr.mxu0 0.0
    %102 = vmatpush1.msra.mxu0 0.0
    %103 = vmatprep.mubr.f32.mxu0 0.0
    %104 = vmatmul.mubr.f32.gmra.mrb[0].mxu0 %v33
    %v105 = vpop.f32.mrb[0].mxu0
    %v106 = vadd.f32 %v29, %v105
    %v107 = vpop.f32.mrb[0].mxu0
    %108 = vdwg.mxu0
    %v109 = vmul.f32 %v106, 0.5
    %v110 = vtanh.pop %v109
    %v111 = vadd.f32 %v110, 1.0
    %v112 = vmul.f32 %v111, 0.5
    %v113 = vld [vmem:[%s3] sm:$0xff]
    %v114 = vld [vmem:[%s3 + $0x8] sm:$0xff]
    %v115 = vld [vmem:[%s3 + $0x10] sm:$0xff]
    %v116 = vld [vmem:[%s3 + $0x18] sm:$0xff]
    %v117 = vld [vmem:[%s3 + $0x20] sm:$0xff]
    %v118 = vld [vmem:[%s3 + $0x28] sm:$0xff]
    %v119 = vld [vmem:[%s3 + $0x30] sm:$0xff]
    %v120 = vld [vmem:[%s3 + $0x38] sm:$0xff]
    %v121 = vld [vmem:[%s3 + $0x40] sm:$0xff]
    %v122 = vld [vmem:[%s3 + $0x48] sm:$0xff]
    %v123 = vld [vmem:[%s3 + $0x50] sm:$0xff]
    %v124 = vld [vmem:[%s3 + $0x58] sm:$0xff]
    %v125 = vld [vmem:[%s3 + $0x60] sm:$0xff]
    %v126 = vld [vmem:[%s3 + $0x68] sm:$0xff]
    %v127 = vld [vmem:[%s3 + $0x70] sm:$0xff]
    %v128 = vld [vmem:[%s3 + $0x78] sm:$0xff]
    %v129 = vld [vmem:[%s4] sm:$0x1]
    %v131 = vlaneseq
    %v132 = vshrl.u32 %v131, 7
    %v133 = vsub.s32 0, %v132
    %v134 = vrot.slane %v129, %v133
    %136 = vmatprep.subr.mxu0 0.0
    %137 = vmatpush1.msra.mxu0 %v113
    %138 = vmatprep.subr.mxu0 0.0
    %139 = vmatpush1.msra.mxu0 %v114
    %140 = vmatprep.subr.mxu0 0.0
    %141 = vmatpush1.msra.mxu0 %v115
    %142 = vmatprep.subr.mxu0 0.0
    %143 = vmatpush1.msra.mxu0 %v116
    %144 = vmatprep.subr.mxu0 0.0
    %145 = vmatpush1.msra.mxu0 %v117
    %146 = vmatprep.subr.mxu0 0.0
    %147 = vmatpush1.msra.mxu0 %v118
    %148 = vmatprep.subr.mxu0 0.0
    %149 = vmatpush1.msra.mxu0 %v119
    %150 = vmatprep.subr.mxu0 0.0
    %151 = vmatpush1.msra.mxu0 %v120
    %152 = vmatprep.subr.mxu0 0.0
    %153 = vmatpush1.msra.mxu0 %v121
    %154 = vmatprep.subr.mxu0 0.0
    %155 = vmatpush1.msra.mxu0 %v122
    %156 = vmatprep.subr.mxu0 0.0
    %157 = vmatpush1.msra.mxu0 %v123
    %158 = vmatprep.subr.mxu0 0.0
    %159 = vmatpush1.msra.mxu0 %v124
    %160 = vmatprep.subr.mxu0 0.0
    %161 = vmatpush1.msra.mxu0 %v125
    %162 = vmatprep.subr.mxu0 0.0
    %163 = vmatpush1.msra.mxu0 %v126
    %164 = vmatprep.subr.mxu0 0.0
    %165 = vmatpush1.msra.mxu0 %v127
    %166 = vmatprep.subr.mxu0 0.0
    %167 = vmatpush1.msra.mxu0 %v128
    %168 = vmatprep.subr.mxu0 0.0
    %169 = vmatpush1.msra.mxu0 0.0
    %170 = vmatprep.subr.mxu0 0.0
    %171 = vmatpush1.msra.mxu0 0.0
    %172 = vmatprep.subr.mxu0 0.0
    %173 = vmatpush1.msra.mxu0 0.0
    %174 = vmatprep.subr.mxu0 0.0
    %175 = vmatpush1.msra.mxu0 0.0
    %176 = vmatprep.subr.mxu0 0.0
    %177 = vmatpush1.msra.mxu0 0.0
    %178 = vmatprep.subr.mxu0 0.0
    %179 = vmatpush1.msra.mxu0 0.0
    %180 = vmatprep.subr.mxu0 0.0
    %181 = vmatpush1.msra.mxu0 0.0
    %182 = vmatprep.subr.mxu0 0.0
    %183 = vmatpush1.msra.mxu0 0.0
    %184 = vmatprep.subr.mxu0 0.0
    %185 = vmatpush1.msra.mxu0 0.0
    %186 = vmatprep.subr.mxu0 0.0
    %187 = vmatpush1.msra.mxu0 0.0
    %188 = vmatprep.subr.mxu0 0.0
    %189 = vmatpush1.msra.mxu0 0.0
    %190 = vmatprep.subr.mxu0 0.0
    %191 = vmatpush1.msra.mxu0 0.0
    %192 = vmatprep.subr.mxu0 0.0
    %193 = vmatpush1.msra.mxu0 0.0
    %194 = vmatprep.subr.mxu0 0.0
    %195 = vmatpush1.msra.mxu0 0.0
    %196 = vmatprep.subr.mxu0 0.0
    %197 = vmatpush1.msra.mxu0 0.0
    %198 = vmatprep.subr.mxu0 0.0
    %199 = vmatpush1.msra.mxu0 0.0
    %200 = vmatprep.mubr.f32.mxu0 0.0
    %201 = vmatmul.mubr.f32.gmra.mrb[0].mxu0 %v112
    %v202 = vpop.f32.mrb[0].mxu0
    %v203 = vadd.f32 %v134, %v202
    %v204 = vpop.f32.mrb[0].mxu0
    %205 = vdwg.mxu0
    %vm206 = vcmask 64512
    %v207 = vsel %vm206, %v203, -inf
    %208 = vmax.xlane.f32.xlu0 %v207
    %v209 = vpop.xlane.xlu0 %208
    %v210 = vsub.f32 %v203, %v209
    %v211 = vmul.f32 %v210, 1.442695
    %v212 = vpow.pop %v211
    %v213 = vsel %vm206, %v212, 0.0
    %214 = vadd.xlane.f32.xlu0 %v213
    %v215 = vpop.xlane.xlu0 %214
    %v216 = vlog2.pop %v215
    %v217 = vmul.f32 %v216, 0.6931472
    %v218 = vsub.f32 %v210, %v217
    %219 = vst.msk [vmem:[#allocation2] sm:$0xff] %vm206, %v218
    // Predicated region
    $region22: #{tpu_custom_call.1} parent=1 // pred_check
      _
    $region23: #{tpu_custom_call.1} parent=1 // pred_check_branch
      %221 = sbr.rel (0) target = $region25
    $region24: #{tpu_custom_call.1} parent=1 // pred_region
      %s223 = ssub.s32 128, 128
      %224 = vsyncadd [#allocation3], %s223
      %s226 = sshll.u32 [#allocation2], 4
      %s227 = int_to_ptr.vmem [resolvable:$true] %s226
      %229 = dma.vmem_to_hbm [thread:$0]  %s227, 128, %s5, [#allocation3]
    $region25: #{tpu_custom_call.1} parent=1 // pred_fallthru
      _
    // Predicated region
    $region26: #{tpu_custom_call.1} parent=1 // pred_check
      _
    $region27: #{tpu_custom_call.1} parent=1 // pred_check_branch
      %231 = sbr.rel (0) target = $region29
    $region28: #{tpu_custom_call.1} parent=1 // pred_region
      %232 = dma.done [#allocation3], 128
    $region29: #{tpu_custom_call.1} parent=1 // pred_fallthru
      _
    %233 = vsyncpa [#allocation3], 1

</llo_original>
